<compile_context>
chip_gen: v7x
topology: tpu7x:2x2x1
jax: 0.10.0
libtpu: 0.0.40
codegen_flags: <defaults>
</compile_context>

<pallas_src>
import functools

import numpy as np
import jax
import jax.numpy as jnp
from jax import lax
from jax.experimental import pallas as pl
from jax.experimental.pallas import tpu as pltpu


def _round_up(x, m):
    return ((x + m - 1) // m) * m


def _integration_times(T, steps, reverse):
    # Mirrors the module: sqrt_end_time parameter, squared again for the end.
    sqrt_end_time = np.sqrt(np.float32(T))
    end_time = float(sqrt_end_time * sqrt_end_time)
    times = np.linspace(0.0, end_time, steps)
    if reverse:
        times = times[::-1]
    return times


def _cnf_kernel(za_ref, wmat_ref, ptab_ref, out_ref, *,
                steps, solver, dts, d_pad, h_pad):
    """Integrates the augmented state (z | logpz-in-lane-D) fully in VMEM.

    za_ref  : (TB, d_pad)            z in lanes [0, D), logpz in lane D.
    wmat_ref: (d_pad + 2*h_pad, LP)  [W1_pad ; W2_pad ; Dmat] packed weights
                                     (bf16 by default -> native MXU path).
    ptab_ref: (1 + n_bias, LP)       row 0 = c2, rows 1.. = t*b1 + c1 per stage.
    """
    # Weights: grid-resident, loaded once, kept in their stored (bf16) dtype.
    w1 = wmat_ref[0:d_pad, 0:h_pad]
    wbig = wmat_ref[d_pad:d_pad + 2 * h_pad, 0:d_pad]
    mm_dtype = w1.dtype

    # Hoist all tiny params out of the unrolled loop (single small load).
    ptab = ptab_ref[...]
    c2 = ptab[0:1, 0:d_pad]                    # lane D (and pad lanes) are zero

    def f_aug(bias_row, za):
        # h = tanh(z @ W1 + t*b1 + c1); bias_row precomputed host-side (1,h_pad).
        h = jnp.tanh(
            jnp.dot(za.astype(mm_dtype), w1,
                    preferred_element_type=jnp.float32) + bias_row)
        # One K=2*h_pad matmul yields dz (lanes [0,D)) and -divergence (lane D):
        # padded hidden lanes have h=0 -> (1-h^2)=1, but their rows of
        # W2_pad/Dmat are zero, so they contribute nothing.
        hg = jnp.concatenate([h, 1.0 - h * h], axis=-1).astype(mm_dtype)
        return jnp.dot(hg, wbig, preferred_element_type=jnp.float32) + c2

    za = za_ref[...]
    n_stages = 1 if solver == "euler" else 4

    # Fixed trip count -> fully unrolled at trace time (LLO visibility).
    for i in range(steps - 1):
        dt = dts[i]                            # Python float, baked in
        base = 1 + i * n_stages
        if solver == "euler":
            za = za + dt * f_aug(ptab[base:base + 1, 0:h_pad], za)
        else:                                  # rk4, incremental accumulation
            k = f_aug(ptab[base + 0:base + 1, 0:h_pad], za)
            acc = k
            k = f_aug(ptab[base + 1:base + 2, 0:h_pad], za + (0.5 * dt) * k)
            acc = acc + 2.0 * k
            k = f_aug(ptab[base + 2:base + 3, 0:h_pad], za + (0.5 * dt) * k)
            acc = acc + 2.0 * k
            k = f_aug(ptab[base + 3:base + 4, 0:h_pad], za + dt * k)
            acc = acc + k
            za = za + (dt / 6.0) * acc

    out_ref[...] = za                          # single lane-dense store


def cnf_forward(params, z, logpz, *, T=1.0, solver="euler", steps=8,
                reverse=False, block_b=512, matmul_dtype=jnp.bfloat16):
    """Pallas-backed equivalent of CNF.forward(z, logpz, reverse).

    matmul_dtype=jnp.bfloat16 (default) uses the native MXU path on all
    generations with f32 accumulation and f32 state; pass jnp.float32 for
    tight (1e-4) agreement with the f32 reference.
    """
    assert solver in ("euler", "rk4"), "only fixed-step solvers implemented"
    B, D = z.shape
    H = params["w1"].shape[1]

    d_pad = _round_up(D + 1, 128)        # +1 spare lane carries logpz
    h_pad = _round_up(H, 128)
    lp = max(d_pad, h_pad)               # shared lane width of packed params

    # Batch tile: sublane-aligned, no over-padding for tiny B; prefer >= 2
    # grid tiles when the batch allows (dual-TC split on v7x).
    tb = min(block_b, _round_up(B, 8))
    if B >= 16 and _round_up(B, tb) // tb < 2:
        tb = _round_up(-(-B // 2), 8)
    b_pad = _round_up(B, tb)

    times = _integration_times(T, steps, reverse)
    dts = tuple(float(times[i + 1] - times[i]) for i in range(steps - 1))

    # Per-stage hidden biases t*b1 + c1, precomputed host-side.
    if solver == "euler":
        stage_t = np.asarray([times[i] for i in range(steps - 1)])
        n_stages = 1
    else:
        stage_t = np.asarray([tv for i in range(steps - 1)
                              for tv in (times[i],
                                         times[i] + 0.5 * dts[i],
                                         times[i] + 0.5 * dts[i],
                                         times[i] + dts[i])])
        n_stages = 4
    stage_t = jnp.asarray(stage_t, jnp.float32).reshape(-1, 1)
    bias_tab = stage_t * params["b1"] + params["c1"]              # (nb, H)

    def lane_pad(x):
        x = x.astype(jnp.float32)
        return jnp.pad(x, ((0, 0), (0, lp - x.shape[1])))

    # Packed f32 table (single DMA, grid-resident): row 0 = c2, rows 1.. = biases.
    ptab = jnp.concatenate([lane_pad(params["c2"]), lane_pad(bias_tab)], axis=0)

    # Exact-divergence diagonal d_k = sum_i W1[i,k] W2[k,i]; folded into the
    # second matmul as column D of Dmat so the MXU computes -div directly.
    ddiag = jnp.sum(params["w1"] * params["w2"].T, axis=0)        # (H,)
    w1p = jnp.pad(params["w1"].astype(jnp.float32),
                  ((0, d_pad - D), (0, lp - H)))
    w2p = jnp.pad(params["w2"].astype(jnp.float32),
                  ((0, h_pad - H), (0, lp - D)))                  # col D is zero
    dmat = jnp.zeros((h_pad, lp), jnp.float32).at[:H, D].set(-ddiag)
    wmat = jnp.concatenate([w1p, w2p, dmat], axis=0).astype(matmul_dtype)

    # Augmented, lane-dense state: z in lanes [0, D), logpz in lane D.
    za = jnp.zeros((b_pad, d_pad), jnp.float32)
    za = za.at[:B, :D].set(z.astype(jnp.float32))
    za = za.at[:B, D].set(logpz.astype(jnp.float32)[:, 0])

    kern = functools.partial(_cnf_kernel, steps=steps, solver=solver,
                             dts=dts, d_pad=d_pad, h_pad=h_pad)

    n_evals = (steps - 1) * n_stages
    cost = pl.CostEstimate(
        flops=int(n_evals * 6 * b_pad * d_pad * h_pad),
        transcendentals=int(n_evals * b_pad * h_pad),
        bytes_accessed=int(4 * 2 * b_pad * d_pad
                           + wmat.size * jnp.dtype(matmul_dtype).itemsize
                           + 4 * ptab.size),
    )

    out = pl.pallas_call(
        kern,
        out_shape=jax.ShapeDtypeStruct((b_pad, d_pad), jnp.float32),
        grid_spec=pltpu.PrefetchScalarGridSpec(
            num_scalar_prefetch=0,
            grid=(b_pad // tb,),
            in_specs=[
                pl.BlockSpec((tb, d_pad), lambda i: (i, 0)),   # state tile
                pl.BlockSpec(wmat.shape, lambda i: (0, 0)),    # packed weights
                pl.BlockSpec(ptab.shape, lambda i: (0, 0)),    # packed params
            ],
            out_specs=pl.BlockSpec((tb, d_pad), lambda i: (i, 0)),
        ),
        compiler_params=pltpu.CompilerParams(
            dimension_semantics=("parallel",)),
        cost_estimate=cost,
    )(za, wmat, ptab)

    z_t = out[:B, :D]
    logpz_t = out[:B, D:D + 1]
    return z_t, logpz_t


def cnf_forward_ref(params, z, logpz, *, T=1.0, solver="euler", steps=8,
                    reverse=False):
    """Pure-JAX reference for correctness checking."""
    times = _integration_times(T, steps, reverse)
    H = params["w1"].shape[1]
    ddiag = jnp.sum(params["w1"] * params["w2"].T, axis=0).reshape(1, H)

    def f_eval(t, zz):
        h = jnp.tanh(zz @ params["w1"] + t * params["b1"] + params["c1"])
        dz = h @ params["w2"] + params["c2"]
        div = jnp.sum((1.0 - h * h) * ddiag, axis=-1, keepdims=True)
        return dz, div

    for i in range(steps - 1):
        t, dt = float(times[i]), float(times[i + 1] - times[i])
        if solver == "euler":
            dz, div = f_eval(t, z)
            z, logpz = z + dt * dz, logpz - dt * div
        else:
            k1z, k1d = f_eval(t, z)
            k2z, k2d = f_eval(t + 0.5 * dt, z + 0.5 * dt * k1z)
            k3z, k3d = f_eval(t + 0.5 * dt, z + 0.5 * dt * k2z)
            k4z, k4d = f_eval(t + dt, z + dt * k3z)
            z = z + (dt / 6.0) * (k1z + 2 * k2z + 2 * k3z + k4z)
            logpz = logpz - (dt / 6.0) * (k1d + 2 * k2d + 2 * k3d + k4d)
    return z, logpz


if __name__ == "__main__":
    B, D, H = 8, 32, 64
    STEPS = 8
    T = 1.0

    key = jax.random.PRNGKey(0)
    kz, kw1, kb1, kc1, kw2, kc2 = jax.random.split(key, 6)

    z = jax.random.normal(kz, (B, D), dtype=jnp.float32)
    logpz = jnp.zeros((B, 1), dtype=jnp.float32)

    params = {
        "w1": 0.2 * jax.random.normal(kw1, (D, H), dtype=jnp.float32),
        "b1": 0.1 * jax.random.normal(kb1, (1, H), dtype=jnp.float32),
        "c1": 0.1 * jax.random.normal(kc1, (1, H), dtype=jnp.float32),
        "w2": 0.2 * jax.random.normal(kw2, (H, D), dtype=jnp.float32),
        "c2": 0.1 * jax.random.normal(kc2, (1, D), dtype=jnp.float32),
    }

    # pure-JAX references
    z_ref, lp_ref = cnf_forward_ref(params, z, logpz, T=T, solver="euler",
                                    steps=STEPS, reverse=False)
    z_ref_r, lp_ref_r = cnf_forward_ref(params, z, logpz, T=T, solver="rk4",
                                        steps=STEPS, reverse=True)

    # f32-operand path: tight agreement with the reference.
    z_f32, lp_f32 = cnf_forward(params, z, logpz, T=T, solver="euler",
                                steps=STEPS, reverse=False,
                                matmul_dtype=jnp.float32)
    z_f32r, lp_f32r = cnf_forward(params, z, logpz, T=T, solver="rk4",
                                  steps=STEPS, reverse=True,
                                  matmul_dtype=jnp.float32)
    jax.block_until_ready((z_f32, lp_f32, z_f32r, lp_f32r))
    assert jnp.allclose(z_f32, z_ref, atol=1e-4, rtol=1e-4)
    assert jnp.allclose(lp_f32, lp_ref, atol=1e-4, rtol=1e-4)
    assert jnp.allclose(z_f32r, z_ref_r, atol=1e-4, rtol=1e-4)
    assert jnp.allclose(lp_f32r, lp_ref_r, atol=1e-4, rtol=1e-4)

    # default bf16-MXU path: looser tolerance (bf16 operand quantization).
    z_t, logpz_t = cnf_forward(params, z, logpz, T=T, solver="euler",
                               steps=STEPS, reverse=False)
    z_r, logpz_r = cnf_forward(params, z, logpz, T=T, solver="rk4",
                               steps=STEPS, reverse=True)
    jax.block_until_ready((z_t, logpz_t, z_r, logpz_r))
    assert jnp.allclose(z_t, z_ref, atol=5e-2, rtol=5e-2)
    assert jnp.allclose(logpz_t, lp_ref, atol=5e-2, rtol=5e-2)
    assert jnp.allclose(z_r, z_ref_r, atol=5e-2, rtol=5e-2)
    assert jnp.allclose(logpz_r, lp_ref_r, atol=5e-2, rtol=5e-2)

    print("KERNEL_OK")
</pallas_src>

<mosaic_0001>
module attributes {stable_mosaic.version = 11 : i64} {
  func.func @_cnf_kernel(%arg0: i32, %arg1: memref<8x128xf32, #tpu.memory_space<vmem>>, %arg2: memref<384x128xf32, #tpu.memory_space<vmem>>, %arg3: memref<8x128xf32, #tpu.memory_space<vmem>>, %arg4: memref<8x128xf32, #tpu.memory_space<vmem>>) attributes {dimension_semantics = [#tpu.dimension_semantics<parallel>], iteration_bounds = array<i64: 1>, scalar_prefetch = 0 : i64, scratch_operands = 0 : i64, tpu.core_type = #tpu.core_type<tc>, window_params = [{transform_indices = @transform_0, window_bounds = array<i64: 8, 128>}, {pipeline_mode = #tpu.pipeline_mode<synchronous>, transform_indices = @transform_1, window_bounds = array<i64: 384, 128>}, {pipeline_mode = #tpu.pipeline_mode<synchronous>, transform_indices = @transform_2, window_bounds = array<i64: 8, 128>}, {transform_indices = @transform_3, window_bounds = array<i64: 8, 128>}]} {
    %c0 = arith.constant 0 : index
    %c0_0 = arith.constant 0 : index
    %0 = vector.load %arg2[%c0, %c0_0] : memref<384x128xf32, #tpu.memory_space<vmem>>, vector<128x128xf32>
    %c128 = arith.constant 128 : index
    %c0_1 = arith.constant 0 : index
    %1 = vector.load %arg2[%c128, %c0_1] : memref<384x128xf32, #tpu.memory_space<vmem>>, vector<256x128xf32>
    %c0_2 = arith.constant 0 : index
    %c0_3 = arith.constant 0 : index
    %2 = vector.load %arg3[%c0_2, %c0_3] : memref<8x128xf32, #tpu.memory_space<vmem>>, vector<8x128xf32>
    %3 = vector.extract_strided_slice %2 {offsets = [0, 0], sizes = [1, 128], strides = [1, 1]} : vector<8x128xf32> to vector<1x128xf32>
    %c0_4 = arith.constant 0 : index
    %c0_5 = arith.constant 0 : index
    %4 = vector.load %arg1[%c0_4, %c0_5] : memref<8x128xf32, #tpu.memory_space<vmem>>, vector<8x128xf32>
    %5 = vector.extract_strided_slice %2 {offsets = [1, 0], sizes = [1, 128], strides = [1, 1]} : vector<8x128xf32> to vector<1x128xf32>
    %cst = arith.constant dense<0.000000e+00> : vector<8x128xf32>
    %6 = tpu.matmul %4, %0, %cst {dimension_numbers = #tpu.dot_dimension_numbers<[1], [0], [0], [1], [0, 0, 1, 1], [], []>} : vector<8x128xf32>, vector<128x128xf32>, vector<8x128xf32> -> vector<8x128xf32>
    %7 = vector.broadcast %5 : vector<1x128xf32> to vector<8x128xf32>
    %8 = arith.addf %6, %7 : vector<8x128xf32>
    %9 = math.tanh %8 : vector<8x128xf32>
    %10 = arith.mulf %9, %9 : vector<8x128xf32>
    %cst_6 = arith.constant 1.000000e+00 : f32
    %11 = vector.broadcast %cst_6 : f32 to vector<8x128xf32>
    %12 = arith.subf %11, %10 : vector<8x128xf32>
    %13 = tpu.concatenate %9, %12 in 1 : vector<8x128xf32>, vector<8x128xf32> -> vector<8x256xf32>
    %cst_7 = arith.constant dense<0.000000e+00> : vector<8x128xf32>
    %14 = tpu.matmul %13, %1, %cst_7 {dimension_numbers = #tpu.dot_dimension_numbers<[1], [0], [0], [1], [0, 0, 1, 1], [], []>} : vector<8x256xf32>, vector<256x128xf32>, vector<8x128xf32> -> vector<8x128xf32>
    %15 = vector.broadcast %3 : vector<1x128xf32> to vector<8x128xf32>
    %16 = arith.addf %14, %15 : vector<8x128xf32>
    %cst_8 = arith.constant 0.142857149 : f32
    %17 = vector.broadcast %cst_8 : f32 to vector<8x128xf32>
    %18 = arith.mulf %17, %16 : vector<8x128xf32>
    %19 = arith.addf %4, %18 : vector<8x128xf32>
    %20 = vector.extract_strided_slice %2 {offsets = [2, 0], sizes = [1, 128], strides = [1, 1]} : vector<8x128xf32> to vector<1x128xf32>
    %cst_9 = arith.constant dense<0.000000e+00> : vector<8x128xf32>
    %21 = tpu.matmul %19, %0, %cst_9 {dimension_numbers = #tpu.dot_dimension_numbers<[1], [0], [0], [1], [0, 0, 1, 1], [], []>} : vector<8x128xf32>, vector<128x128xf32>, vector<8x128xf32> -> vector<8x128xf32>
    %22 = vector.broadcast %20 : vector<1x128xf32> to vector<8x128xf32>
    %23 = arith.addf %21, %22 : vector<8x128xf32>
    %24 = math.tanh %23 : vector<8x128xf32>
    %25 = arith.mulf %24, %24 : vector<8x128xf32>
    %cst_10 = arith.constant 1.000000e+00 : f32
    %26 = vector.broadcast %cst_10 : f32 to vector<8x128xf32>
    %27 = arith.subf %26, %25 : vector<8x128xf32>
    %28 = tpu.concatenate %24, %27 in 1 : vector<8x128xf32>, vector<8x128xf32> -> vector<8x256xf32>
    %cst_11 = arith.constant dense<0.000000e+00> : vector<8x128xf32>
    %29 = tpu.matmul %28, %1, %cst_11 {dimension_numbers = #tpu.dot_dimension_numbers<[1], [0], [0], [1], [0, 0, 1, 1], [], []>} : vector<8x256xf32>, vector<256x128xf32>, vector<8x128xf32> -> vector<8x128xf32>
    %30 = vector.broadcast %3 : vector<1x128xf32> to vector<8x128xf32>
    %31 = arith.addf %29, %30 : vector<8x128xf32>
    %cst_12 = arith.constant 0.142857149 : f32
    %32 = vector.broadcast %cst_12 : f32 to vector<8x128xf32>
    %33 = arith.mulf %32, %31 : vector<8x128xf32>
    %34 = arith.addf %19, %33 : vector<8x128xf32>
    %35 = vector.extract_strided_slice %2 {offsets = [3, 0], sizes = [1, 128], strides = [1, 1]} : vector<8x128xf32> to vector<1x128xf32>
    %cst_13 = arith.constant dense<0.000000e+00> : vector<8x128xf32>
    %36 = tpu.matmul %34, %0, %cst_13 {dimension_numbers = #tpu.dot_dimension_numbers<[1], [0], [0], [1], [0, 0, 1, 1], [], []>} : vector<8x128xf32>, vector<128x128xf32>, vector<8x128xf32> -> vector<8x128xf32>
    %37 = vector.broadcast %35 : vector<1x128xf32> to vector<8x128xf32>
    %38 = arith.addf %36, %37 : vector<8x128xf32>
    %39 = math.tanh %38 : vector<8x128xf32>
    %40 = arith.mulf %39, %39 : vector<8x128xf32>
    %cst_14 = arith.constant 1.000000e+00 : f32
    %41 = vector.broadcast %cst_14 : f32 to vector<8x128xf32>
    %42 = arith.subf %41, %40 : vector<8x128xf32>
    %43 = tpu.concatenate %39, %42 in 1 : vector<8x128xf32>, vector<8x128xf32> -> vector<8x256xf32>
    %cst_15 = arith.constant dense<0.000000e+00> : vector<8x128xf32>
    %44 = tpu.matmul %43, %1, %cst_15 {dimension_numbers = #tpu.dot_dimension_numbers<[1], [0], [0], [1], [0, 0, 1, 1], [], []>} : vector<8x256xf32>, vector<256x128xf32>, vector<8x128xf32> -> vector<8x128xf32>
    %45 = vector.broadcast %3 : vector<1x128xf32> to vector<8x128xf32>
    %46 = arith.addf %44, %45 : vector<8x128xf32>
    %cst_16 = arith.constant 0.142857149 : f32
    %47 = vector.broadcast %cst_16 : f32 to vector<8x128xf32>
    %48 = arith.mulf %47, %46 : vector<8x128xf32>
    %49 = arith.addf %34, %48 : vector<8x128xf32>
    %50 = vector.extract_strided_slice %2 {offsets = [4, 0], sizes = [1, 128], strides = [1, 1]} : vector<8x128xf32> to vector<1x128xf32>
    %cst_17 = arith.constant dense<0.000000e+00> : vector<8x128xf32>
    %51 = tpu.matmul %49, %0, %cst_17 {dimension_numbers = #tpu.dot_dimension_numbers<[1], [0], [0], [1], [0, 0, 1, 1], [], []>} : vector<8x128xf32>, vector<128x128xf32>, vector<8x128xf32> -> vector<8x128xf32>
    %52 = vector.broadcast %50 : vector<1x128xf32> to vector<8x128xf32>
    %53 = arith.addf %51, %52 : vector<8x128xf32>
    %54 = math.tanh %53 : vector<8x128xf32>
    %55 = arith.mulf %54, %54 : vector<8x128xf32>
    %cst_18 = arith.constant 1.000000e+00 : f32
    %56 = vector.broadcast %cst_18 : f32 to vector<8x128xf32>
    %57 = arith.subf %56, %55 : vector<8x128xf32>
    %58 = tpu.concatenate %54, %57 in 1 : vector<8x128xf32>, vector<8x128xf32> -> vector<8x256xf32>
    %cst_19 = arith.constant dense<0.000000e+00> : vector<8x128xf32>
    %59 = tpu.matmul %58, %1, %cst_19 {dimension_numbers = #tpu.dot_dimension_numbers<[1], [0], [0], [1], [0, 0, 1, 1], [], []>} : vector<8x256xf32>, vector<256x128xf32>, vector<8x128xf32> -> vector<8x128xf32>
    %60 = vector.broadcast %3 : vector<1x128xf32> to vector<8x128xf32>
    %61 = arith.addf %59, %60 : vector<8x128xf32>
    %cst_20 = arith.constant 0.142857149 : f32
    %62 = vector.broadcast %cst_20 : f32 to vector<8x128xf32>
    %63 = arith.mulf %62, %61 : vector<8x128xf32>
    %64 = arith.addf %49, %63 : vector<8x128xf32>
    %65 = vector.extract_strided_slice %2 {offsets = [5, 0], sizes = [1, 128], strides = [1, 1]} : vector<8x128xf32> to vector<1x128xf32>
    %cst_21 = arith.constant dense<0.000000e+00> : vector<8x128xf32>
    %66 = tpu.matmul %64, %0, %cst_21 {dimension_numbers = #tpu.dot_dimension_numbers<[1], [0], [0], [1], [0, 0, 1, 1], [], []>} : vector<8x128xf32>, vector<128x128xf32>, vector<8x128xf32> -> vector<8x128xf32>
    %67 = vector.broadcast %65 : vector<1x128xf32> to vector<8x128xf32>
    %68 = arith.addf %66, %67 : vector<8x128xf32>
    %69 = math.tanh %68 : vector<8x128xf32>
    %70 = arith.mulf %69, %69 : vector<8x128xf32>
    %cst_22 = arith.constant 1.000000e+00 : f32
    %71 = vector.broadcast %cst_22 : f32 to vector<8x128xf32>
    %72 = arith.subf %71, %70 : vector<8x128xf32>
    %73 = tpu.concatenate %69, %72 in 1 : vector<8x128xf32>, vector<8x128xf32> -> vector<8x256xf32>
    %cst_23 = arith.constant dense<0.000000e+00> : vector<8x128xf32>
    %74 = tpu.matmul %73, %1, %cst_23 {dimension_numbers = #tpu.dot_dimension_numbers<[1], [0], [0], [1], [0, 0, 1, 1], [], []>} : vector<8x256xf32>, vector<256x128xf32>, vector<8x128xf32> -> vector<8x128xf32>
    %75 = vector.broadcast %3 : vector<1x128xf32> to vector<8x128xf32>
    %76 = arith.addf %74, %75 : vector<8x128xf32>
    %cst_24 = arith.constant 0.142857149 : f32
    %77 = vector.broadcast %cst_24 : f32 to vector<8x128xf32>
    %78 = arith.mulf %77, %76 : vector<8x128xf32>
    %79 = arith.addf %64, %78 : vector<8x128xf32>
    %80 = vector.extract_strided_slice %2 {offsets = [6, 0], sizes = [1, 128], strides = [1, 1]} : vector<8x128xf32> to vector<1x128xf32>
    %cst_25 = arith.constant dense<0.000000e+00> : vector<8x128xf32>
    %81 = tpu.matmul %79, %0, %cst_25 {dimension_numbers = #tpu.dot_dimension_numbers<[1], [0], [0], [1], [0, 0, 1, 1], [], []>} : vector<8x128xf32>, vector<128x128xf32>, vector<8x128xf32> -> vector<8x128xf32>
    %82 = vector.broadcast %80 : vector<1x128xf32> to vector<8x128xf32>
    %83 = arith.addf %81, %82 : vector<8x128xf32>
    %84 = math.tanh %83 : vector<8x128xf32>
    %85 = arith.mulf %84, %84 : vector<8x128xf32>
    %cst_26 = arith.constant 1.000000e+00 : f32
    %86 = vector.broadcast %cst_26 : f32 to vector<8x128xf32>
    %87 = arith.subf %86, %85 : vector<8x128xf32>
    %88 = tpu.concatenate %84, %87 in 1 : vector<8x128xf32>, vector<8x128xf32> -> vector<8x256xf32>
    %cst_27 = arith.constant dense<0.000000e+00> : vector<8x128xf32>
    %89 = tpu.matmul %88, %1, %cst_27 {dimension_numbers = #tpu.dot_dimension_numbers<[1], [0], [0], [1], [0, 0, 1, 1], [], []>} : vector<8x256xf32>, vector<256x128xf32>, vector<8x128xf32> -> vector<8x128xf32>
    %90 = vector.broadcast %3 : vector<1x128xf32> to vector<8x128xf32>
    %91 = arith.addf %89, %90 : vector<8x128xf32>
    %cst_28 = arith.constant 0.142857149 : f32
    %92 = vector.broadcast %cst_28 : f32 to vector<8x128xf32>
    %93 = arith.mulf %92, %91 : vector<8x128xf32>
    %94 = arith.addf %79, %93 : vector<8x128xf32>
    %95 = vector.extract_strided_slice %2 {offsets = [7, 0], sizes = [1, 128], strides = [1, 1]} : vector<8x128xf32> to vector<1x128xf32>
    %cst_29 = arith.constant dense<0.000000e+00> : vector<8x128xf32>
    %96 = tpu.matmul %94, %0, %cst_29 {dimension_numbers = #tpu.dot_dimension_numbers<[1], [0], [0], [1], [0, 0, 1, 1], [], []>} : vector<8x128xf32>, vector<128x128xf32>, vector<8x128xf32> -> vector<8x128xf32>
    %97 = vector.broadcast %95 : vector<1x128xf32> to vector<8x128xf32>
    %98 = arith.addf %96, %97 : vector<8x128xf32>
    %99 = math.tanh %98 : vector<8x128xf32>
    %100 = arith.mulf %99, %99 : vector<8x128xf32>
    %cst_30 = arith.constant 1.000000e+00 : f32
    %101 = vector.broadcast %cst_30 : f32 to vector<8x128xf32>
    %102 = arith.subf %101, %100 : vector<8x128xf32>
    %103 = tpu.concatenate %99, %102 in 1 : vector<8x128xf32>, vector<8x128xf32> -> vector<8x256xf32>
    %cst_31 = arith.constant dense<0.000000e+00> : vector<8x128xf32>
    %104 = tpu.matmul %103, %1, %cst_31 {dimension_numbers = #tpu.dot_dimension_numbers<[1], [0], [0], [1], [0, 0, 1, 1], [], []>} : vector<8x256xf32>, vector<256x128xf32>, vector<8x128xf32> -> vector<8x128xf32>
    %105 = vector.broadcast %3 : vector<1x128xf32> to vector<8x128xf32>
    %106 = arith.addf %104, %105 : vector<8x128xf32>
    %cst_32 = arith.constant 0.142857149 : f32
    %107 = vector.broadcast %cst_32 : f32 to vector<8x128xf32>
    %108 = arith.mulf %107, %106 : vector<8x128xf32>
    %109 = arith.addf %94, %108 : vector<8x128xf32>
    %c0_33 = arith.constant 0 : index
    %c0_34 = arith.constant 0 : index
    %110 = vector.load %arg4[%c0_33, %c0_34] : memref<8x128xf32, #tpu.memory_space<vmem>>, vector<8x128xf32>
    tpu.vector_store %arg4[%c0_33, %c0_34], %109 {strides = array<i32>} : memref<8x128xf32, #tpu.memory_space<vmem>>, vector<8x128xf32>,
    return
  }
  func.func @transform_0(%arg0: i32) -> (i32, i32) {
    %c0_i32 = arith.constant 0 : i32
    %c0_i32_0 = arith.constant 0 : i32
    return %arg0, %c0_i32 : i32, i32
  }
  func.func @transform_1(%arg0: i32) -> (i32, i32) {
    %c0_i32 = arith.constant 0 : i32
    %c0_i32_0 = arith.constant 0 : i32
    %c0_i32_1 = arith.constant 0 : i32
    return %c0_i32, %c0_i32_0 : i32, i32
  }
  func.func @transform_2(%arg0: i32) -> (i32, i32) {
    %c0_i32 = arith.constant 0 : i32
    %c0_i32_0 = arith.constant 0 : i32
    %c0_i32_1 = arith.constant 0 : i32
    return %c0_i32, %c0_i32_0 : i32, i32
  }
  func.func @transform_3(%arg0: i32) -> (i32, i32) {
    %c0_i32 = arith.constant 0 : i32
    %c0_i32_0 = arith.constant 0 : i32
    return %arg0, %c0_i32 : i32, i32
  }
}

</mosaic_0001>

<llo_original>
// kernel: tpu_custom_call.1
$region0: #{tpu_custom_call.1}
  #allocation0 [shape = 'u32[]', space=smem, size = 0x4, offset = 0x4, fixed_abs, tag = 'smem constant byte address 0x4 - core index']
  #allocation1 [shape = 'u32[144,128]{1,0:T(1,128)}', space=vmem, size = 0x12000, scoped, tag = 'internal scratch']
  %s0 = inlined_call_operand.hbm [shape: f32[8,128], index: 0, kind: input, shape index: {}]
  %s1 = inlined_call_operand.hbm [shape: f32[384,128], index: 1, kind: input, shape index: {}]
  %s2 = inlined_call_operand.hbm [shape: f32[8,128], index: 2, kind: input, shape index: {}]
  %s3 = inlined_call_operand.hbm [shape: f32[8,128], index: 3, kind: output, shape index: {}]
  %s4 = sld [smem:[#allocation0]]
  $region34: #{tpu_custom_call.1} parent=0
    _
  %s6 = ssub.s32 1, %s4
  %s7 = scalar_select 0, %s6, %s4
  $region1: #{tpu_custom_call.1} parent=0
    #allocation2 [shape = 'u8[4096]{0}', space=vmem, size = 0x1000, scoped, tag = 'input window, operand 0, single buffered']
    #allocation3 [shape = 's32[1]{0}', space=sflag, size = 0x4, scoped, tag = 'scoped memory for tpu_custom_call.1']
    #allocation4 [shape = 's32[1]{0}', space=sflag, size = 0x4, scoped, tag = 'scoped memory for tpu_custom_call.1']
    #allocation5 [shape = 'u8[196608]{0}', space=vmem, size = 0x30000, scoped, tag = 'input window, operand 1, single buffered']
    #allocation6 [shape = 's32[1]{0}', space=sflag, size = 0x4, scoped, tag = 'scoped memory for tpu_custom_call.1']
    #allocation7 [shape = 'u8[4096]{0}', space=vmem, size = 0x1000, scoped, tag = 'input window, operand 2, single buffered']
    #allocation8 [shape = 'u8[4096]{0}', space=vmem, size = 0x1000, scoped, tag = 'output window, operand 0, single buffered']
    %8 = vsyncpa [#allocation3], 0
    %9 = vsyncpa [#allocation6], 0
    %10 = vsyncpa [#allocation4], 0
    // Predicated region
    $region2: #{tpu_custom_call.1} parent=1 // pred_check
      _
    $region3: #{tpu_custom_call.1} parent=1 // pred_check_branch
      %12 = sbr.rel (0) target = $region5
    $region4: #{tpu_custom_call.1} parent=1 // pred_region
      %s14 = ssub.s32 128, 128
      %15 = vsyncadd [#allocation3], %s14
      %s17 = sshll.u32 [#allocation2], 4
      %s18 = int_to_ptr.vmem [resolvable:$true] %s17
      %20 = dma.hbm_to_vmem [thread:$0]  %s0, 128, %s18, [#allocation3]
    $region5: #{tpu_custom_call.1} parent=1 // pred_fallthru
      _
    // Predicated region
    $region6: #{tpu_custom_call.1} parent=1 // pred_check
      _
    $region7: #{tpu_custom_call.1} parent=1 // pred_check_branch
      %22 = sbr.rel (0) target = $region9
    $region8: #{tpu_custom_call.1} parent=1 // pred_region
      %s24 = ssub.s32 6144, 6144
      %25 = vsyncadd [#allocation6], %s24
      %s26 = sshll.u32 [#allocation5], 4
      %s27 = int_to_ptr.vmem [resolvable:$true] %s26
      %32 = dma.hbm_to_vmem [thread:$0]  %s1, 6144, %s27, [#allocation6], 128, 128, 8
    $region9: #{tpu_custom_call.1} parent=1 // pred_fallthru
      _
    // Predicated region
    $region10: #{tpu_custom_call.1} parent=1 // pred_check
      _
    $region11: #{tpu_custom_call.1} parent=1 // pred_check_branch
      %34 = sbr.rel (0) target = $region13
    $region12: #{tpu_custom_call.1} parent=1 // pred_region
      %s36 = ssub.s32 128, 128
      %37 = vsyncadd [#allocation6], %s36
      %s39 = sshll.u32 [#allocation7], 4
      %s40 = int_to_ptr.vmem [resolvable:$true] %s39
      %42 = dma.hbm_to_vmem [thread:$0]  %s2, 128, %s40, [#allocation6]
    $region13: #{tpu_custom_call.1} parent=1 // pred_fallthru
      _
    // Predicated region
    $region14: #{tpu_custom_call.1} parent=1 // pred_check
      _
    $region15: #{tpu_custom_call.1} parent=1 // pred_check_branch
      %44 = sbr.rel (0) target = $region17
    $region16: #{tpu_custom_call.1} parent=1 // pred_region
      %45 = dma.done [#allocation3], 128
    $region17: #{tpu_custom_call.1} parent=1 // pred_fallthru
      _
    // Predicated region
    $region18: #{tpu_custom_call.1} parent=1 // pred_check
      _
    $region19: #{tpu_custom_call.1} parent=1 // pred_check_branch
      %47 = sbr.rel (0) target = $region21
    $region20: #{tpu_custom_call.1} parent=1 // pred_region
      %48 = dma.done [#allocation6], 6144
    $region21: #{tpu_custom_call.1} parent=1 // pred_fallthru
      _
    // Predicated region
    $region22: #{tpu_custom_call.1} parent=1 // pred_check
      _
    $region23: #{tpu_custom_call.1} parent=1 // pred_check_branch
      %50 = sbr.rel (0) target = $region25
    $region24: #{tpu_custom_call.1} parent=1 // pred_region
      %51 = dma.done [#allocation6], 128
    $region25: #{tpu_custom_call.1} parent=1 // pred_fallthru
      _
    %v52 = vld [vmem:[#allocation5] sm:$0xff]
    %v53 = vld [vmem:[#allocation5 + $0x8] sm:$0xff]
    %v54 = vld [vmem:[#allocation5 + $0x10] sm:$0xff]
    %v55 = vld [vmem:[#allocation5 + $0x18] sm:$0xff]
    %v56 = vld [vmem:[#allocation5 + $0x20] sm:$0xff]
    %v57 = vld [vmem:[#allocation5 + $0x28] sm:$0xff]
    %v58 = vld [vmem:[#allocation5 + $0x30] sm:$0xff]
    %v59 = vld [vmem:[#allocation5 + $0x38] sm:$0xff]
    %v60 = vld [vmem:[#allocation5 + $0x40] sm:$0xff]
    %v61 = vld [vmem:[#allocation5 + $0x48] sm:$0xff]
    %v62 = vld [vmem:[#allocation5 + $0x50] sm:$0xff]
    %v63 = vld [vmem:[#allocation5 + $0x58] sm:$0xff]
    %v64 = vld [vmem:[#allocation5 + $0x60] sm:$0xff]
    %v65 = vld [vmem:[#allocation5 + $0x68] sm:$0xff]
    %v66 = vld [vmem:[#allocation5 + $0x70] sm:$0xff]
    %v67 = vld [vmem:[#allocation5 + $0x78] sm:$0xff]
    %v68 = vld [vmem:[#allocation5 + $0x80] sm:$0xff]
    %v69 = vld [vmem:[#allocation5 + $0x88] sm:$0xff]
    %v70 = vld [vmem:[#allocation5 + $0x90] sm:$0xff]
    %v71 = vld [vmem:[#allocation5 + $0x98] sm:$0xff]
    %v72 = vld [vmem:[#allocation5 + $0xa0] sm:$0xff]
    %v73 = vld [vmem:[#allocation5 + $0xa8] sm:$0xff]
    %v74 = vld [vmem:[#allocation5 + $0xb0] sm:$0xff]
    %v75 = vld [vmem:[#allocation5 + $0xb8] sm:$0xff]
    %v76 = vld [vmem:[#allocation5 + $0xc0] sm:$0xff]
    %v77 = vld [vmem:[#allocation5 + $0xc8] sm:$0xff]
    %v78 = vld [vmem:[#allocation5 + $0xd0] sm:$0xff]
    %v79 = vld [vmem:[#allocation5 + $0xd8] sm:$0xff]
    %v80 = vld [vmem:[#allocation5 + $0xe0] sm:$0xff]
    %v81 = vld [vmem:[#allocation5 + $0xe8] sm:$0xff]
    %v82 = vld [vmem:[#allocation5 + $0xf0] sm:$0xff]
    %v83 = vld [vmem:[#allocation5 + $0xf8] sm:$0xff]
    %v84 = vld [vmem:[#allocation5 + $0x100] sm:$0xff]
    %v85 = vld [vmem:[#allocation5 + $0x108] sm:$0xff]
    %v86 = vld [vmem:[#allocation5 + $0x110] sm:$0xff]
    %v87 = vld [vmem:[#allocation5 + $0x118] sm:$0xff]
    %v88 = vld [vmem:[#allocation5 + $0x120] sm:$0xff]
    %v89 = vld [vmem:[#allocation5 + $0x128] sm:$0xff]
    %v90 = vld [vmem:[#allocation5 + $0x130] sm:$0xff]
    %v91 = vld [vmem:[#allocation5 + $0x138] sm:$0xff]
    %v92 = vld [vmem:[#allocation5 + $0x140] sm:$0xff]
    %v93 = vld [vmem:[#allocation5 + $0x148] sm:$0xff]
    %v94 = vld [vmem:[#allocation5 + $0x150] sm:$0xff]
    %v95 = vld [vmem:[#allocation5 + $0x158] sm:$0xff]
    %v96 = vld [vmem:[#allocation5 + $0x160] sm:$0xff]
    %v97 = vld [vmem:[#allocation5 + $0x168] sm:$0xff]
    %v98 = vld [vmem:[#allocation5 + $0x170] sm:$0xff]
    %v99 = vld [vmem:[#allocation5 + $0x178] sm:$0xff]
    %v100 = vld [vmem:[#allocation7] sm:$0xff]
    %v101 = vld [vmem:[#allocation2] sm:$0xff]
    %v102 = vlaneseq
    %v103 = vshrl.u32 %v102, 7
    %v104 = vsub.s32 1, %v103
    %v105 = vrot.slane %v100, %v104
    %106 = vmatprep.subr.mxu0 0.0
    %107 = vmatpush1.msra.mxu0 %v52
    %108 = vmatprep.subr.mxu0 0.0
    %109 = vmatpush1.msra.mxu0 %v53
    %110 = vmatprep.subr.mxu0 0.0
    %111 = vmatpush1.msra.mxu0 %v54
    %112 = vmatprep.subr.mxu0 0.0
    %113 = vmatpush1.msra.mxu0 %v55
    %114 = vmatprep.subr.mxu0 0.0
    %115 = vmatpush1.msra.mxu0 %v56
    %116 = vmatprep.subr.mxu0 0.0
    %117 = vmatpush1.msra.mxu0 %v57
    %118 = vmatprep.subr.mxu0 0.0
    %119 = vmatpush1.msra.mxu0 %v58
    %120 = vmatprep.subr.mxu0 0.0
    %121 = vmatpush1.msra.mxu0 %v59
    %122 = vmatprep.subr.mxu0 0.0
    %123 = vmatpush1.msra.mxu0 %v60
    %124 = vmatprep.subr.mxu0 0.0
    %125 = vmatpush1.msra.mxu0 %v61
    %126 = vmatprep.subr.mxu0 0.0
    %127 = vmatpush1.msra.mxu0 %v62
    %128 = vmatprep.subr.mxu0 0.0
    %129 = vmatpush1.msra.mxu0 %v63
    %130 = vmatprep.subr.mxu0 0.0
    %131 = vmatpush1.msra.mxu0 %v64
    %132 = vmatprep.subr.mxu0 0.0
    %133 = vmatpush1.msra.mxu0 %v65
    %134 = vmatprep.subr.mxu0 0.0
    %135 = vmatpush1.msra.mxu0 %v66
    %136 = vmatprep.subr.mxu0 0.0
    %137 = vmatpush1.msra.mxu0 %v67
    %138 = vmatprep.subr.mxu0 0.0
    %139 = vmatpush1.msra.mxu0 0.0
    %140 = vmatprep.subr.mxu0 0.0
    %141 = vmatpush1.msra.mxu0 0.0
    %142 = vmatprep.subr.mxu0 0.0
    %143 = vmatpush1.msra.mxu0 0.0
    %144 = vmatprep.subr.mxu0 0.0
    %145 = vmatpush1.msra.mxu0 0.0
    %146 = vmatprep.subr.mxu0 0.0
    %147 = vmatpush1.msra.mxu0 0.0
    %148 = vmatprep.subr.mxu0 0.0
    %149 = vmatpush1.msra.mxu0 0.0
    %150 = vmatprep.subr.mxu0 0.0
    %151 = vmatpush1.msra.mxu0 0.0
    %152 = vmatprep.subr.mxu0 0.0
    %153 = vmatpush1.msra.mxu0 0.0
    %154 = vmatprep.subr.mxu0 0.0
    %155 = vmatpush1.msra.mxu0 0.0
    %156 = vmatprep.subr.mxu0 0.0
    %157 = vmatpush1.msra.mxu0 0.0
    %158 = vmatprep.subr.mxu0 0.0
    %159 = vmatpush1.msra.mxu0 0.0
    %160 = vmatprep.subr.mxu0 0.0
    %161 = vmatpush1.msra.mxu0 0.0
    %162 = vmatprep.subr.mxu0 0.0
    %163 = vmatpush1.msra.mxu0 0.0
    %164 = vmatprep.subr.mxu0 0.0
    %165 = vmatpush1.msra.mxu0 0.0
    %166 = vmatprep.subr.mxu0 0.0
    %167 = vmatpush1.msra.mxu0 0.0
    %168 = vmatprep.subr.mxu0 0.0
    %169 = vmatpush1.msra.mxu0 0.0
    %170 = vmatprep.mubr.f32.mxu0 0.0
    %171 = vmatmul.mubr.f32.gmra.mrb[0].mxu0 %v101
    %v172 = vpop.f32.mrb[0].mxu0
    %v173 = vadd.f32 %v105, %v172
    %v174 = vpop.f32.mrb[0].mxu0
    %175 = vdwg.mxu0
    %v176 = vtanh.pop %v173
    %v177 = vmul.f32 %v176, %v176
    %v178 = vsub.f32 1.0, %v177
    %v179 = vlaneseq
    %v180 = vshrl.u32 %v179, 7
    %v181 = vsub.s32 0, %v180
    %v182 = vrot.slane %v100, %v181
    %183 = vmatprep.subr.mxu0 0.0
    %184 = vmatpush1.msra.mxu0 %v68
    %185 = vmatprep.subr.mxu0 0.0
    %186 = vmatpush1.msra.mxu0 %v69
    %187 = vmatprep.subr.mxu0 0.0
    %188 = vmatpush1.msra.mxu0 %v70
    %189 = vmatprep.subr.mxu0 0.0
    %190 = vmatpush1.msra.mxu0 %v71
    %191 = vmatprep.subr.mxu0 0.0
    %192 = vmatpush1.msra.mxu0 %v72
    %193 = vmatprep.subr.mxu0 0.0
    %194 = vmatpush1.msra.mxu0 %v73
    %195 = vmatprep.subr.mxu0 0.0
    %196 = vmatpush1.msra.mxu0 %v74
    %197 = vmatprep.subr.mxu0 0.0
    %198 = vmatpush1.msra.mxu0 %v75
    %199 = vmatprep.subr.mxu0 0.0
    %200 = vmatpush1.msra.mxu0 %v76
    %201 = vmatprep.subr.mxu0 0.0
    %202 = vmatpush1.msra.mxu0 %v77
    %203 = vmatprep.subr.mxu0 0.0
    %204 = vmatpush1.msra.mxu0 %v78
    %205 = vmatprep.subr.mxu0 0.0
    %206 = vmatpush1.msra.mxu0 %v79
    %207 = vmatprep.subr.mxu0 0.0
    %208 = vmatpush1.msra.mxu0 %v80
    %209 = vmatprep.subr.mxu0 0.0
    %210 = vmatpush1.msra.mxu0 %v81
    %211 = vmatprep.subr.mxu0 0.0
    %212 = vmatpush1.msra.mxu0 %v82
    %213 = vmatprep.subr.mxu0 0.0
    %214 = vmatpush1.msra.mxu0 %v83
    %215 = vmatprep.subr.mxu0 0.0
    %216 = vmatpush1.msra.mxu0 %v84
    %217 = vmatprep.subr.mxu0 0.0
    %218 = vmatpush1.msra.mxu0 %v85
    %219 = vmatprep.subr.mxu0 0.0
    %220 = vmatpush1.msra.mxu0 %v86
    %221 = vmatprep.subr.mxu0 0.0
    %222 = vmatpush1.msra.mxu0 %v87
    %223 = vmatprep.subr.mxu0 0.0
    %224 = vmatpush1.msra.mxu0 %v88
    %225 = vmatprep.subr.mxu0 0.0
    %226 = vmatpush1.msra.mxu0 %v89
    %227 = vmatprep.subr.mxu0 0.0
    %228 = vmatpush1.msra.mxu0 %v90
    %229 = vmatprep.subr.mxu0 0.0
    %230 = vmatpush1.msra.mxu0 %v91
    %231 = vmatprep.subr.mxu0 0.0
    %232 = vmatpush1.msra.mxu0 %v92
    %233 = vmatprep.subr.mxu0 0.0
    %234 = vmatpush1.msra.mxu0 %v93
    %235 = vmatprep.subr.mxu0 0.0
    %236 = vmatpush1.msra.mxu0 %v94
    %237 = vmatprep.subr.mxu0 0.0
    %238 = vmatpush1.msra.mxu0 %v95
    %239 = vmatprep.subr.mxu0 0.0
    %240 = vmatpush1.msra.mxu0 %v96
    %241 = vmatprep.subr.mxu0 0.0
    %242 = vmatpush1.msra.mxu0 %v97
    %243 = vmatprep.subr.mxu0 0.0
    %244 = vmatpush1.msra.mxu0 %v98
    %245 = vmatprep.subr.mxu0 0.0
    %246 = vmatpush1.msra.mxu0 %v99
    %247 = vmatprep.mubr.f32.mxu0 %v178
    %248 = vmatmul.mubr.f32.gmra.mrb[0].mxu0 %v176
    %v249 = vpop.f32.mrb[0].mxu0
    %v250 = vadd.f32 %v182, %v249
    %v251 = vpop.f32.mrb[0].mxu0
    %252 = vdwg.mxu0
    %v253 = vmul.f32 %v250, 0.14285715
    %v254 = vadd.f32 %v101, %v253
    %v255 = vlaneseq
    %v256 = vshrl.u32 %v255, 7
    %v257 = vsub.s32 2, %v256
    %v258 = vrot.slane %v100, %v257
    %259 = vmatprep.subr.mxu0 0.0
    %260 = vmatpush1.msra.mxu0 %v52
    %261 = vmatprep.subr.mxu0 0.0
    %262 = vmatpush1.msra.mxu0 %v53
    %263 = vmatprep.subr.mxu0 0.0
    %264 = vmatpush1.msra.mxu0 %v54
    %265 = vmatprep.subr.mxu0 0.0
    %266 = vmatpush1.msra.mxu0 %v55
    %267 = vmatprep.subr.mxu0 0.0
    %268 = vmatpush1.msra.mxu0 %v56
    %269 = vmatprep.subr.mxu0 0.0
    %270 = vmatpush1.msra.mxu0 %v57
    %271 = vmatprep.subr.mxu0 0.0
    %272 = vmatpush1.msra.mxu0 %v58
    %273 = vmatprep.subr.mxu0 0.0
    %274 = vmatpush1.msra.mxu0 %v59
    %275 = vmatprep.subr.mxu0 0.0
    %276 = vmatpush1.msra.mxu0 %v60
    %277 = vmatprep.subr.mxu0 0.0
    %278 = vmatpush1.msra.mxu0 %v61
    %279 = vmatprep.subr.mxu0 0.0
    %280 = vmatpush1.msra.mxu0 %v62
    %281 = vmatprep.subr.mxu0 0.0
    %282 = vmatpush1.msra.mxu0 %v63
    %283 = vmatprep.subr.mxu0 0.0
    %284 = vmatpush1.msra.mxu0 %v64
    %285 = vmatprep.subr.mxu0 0.0
    %286 = vmatpush1.msra.mxu0 %v65
    %287 = vmatprep.subr.mxu0 0.0
    %288 = vmatpush1.msra.mxu0 %v66
    %289 = vmatprep.subr.mxu0 0.0
    %290 = vmatpush1.msra.mxu0 %v67
    %291 = vmatprep.subr.mxu0 0.0
    %292 = vmatpush1.msra.mxu0 0.0
    %293 = vmatprep.subr.mxu0 0.0
    %294 = vmatpush1.msra.mxu0 0.0
    %295 = vmatprep.subr.mxu0 0.0
    %296 = vmatpush1.msra.mxu0 0.0
    %297 = vmatprep.subr.mxu0 0.0
    %298 = vmatpush1.msra.mxu0 0.0
    %299 = vmatprep.subr.mxu0 0.0
    %300 = vmatpush1.msra.mxu0 0.0
    %301 = vmatprep.subr.mxu0 0.0
    %302 = vmatpush1.msra.mxu0 0.0
    %303 = vmatprep.subr.mxu0 0.0
    %304 = vmatpush1.msra.mxu0 0.0
    %305 = vmatprep.subr.mxu0 0.0
    %306 = vmatpush1.msra.mxu0 0.0
    %307 = vmatprep.subr.mxu0 0.0
    %308 = vmatpush1.msra.mxu0 0.0
    %309 = vmatprep.subr.mxu0 0.0
    %310 = vmatpush1.msra.mxu0 0.0
    %311 = vmatprep.subr.mxu0 0.0
    %312 = vmatpush1.msra.mxu0 0.0
    %313 = vmatprep.subr.mxu0 0.0
    %314 = vmatpush1.msra.mxu0 0.0
    %315 = vmatprep.subr.mxu0 0.0
    %316 = vmatpush1.msra.mxu0 0.0
    %317 = vmatprep.subr.mxu0 0.0
    %318 = vmatpush1.msra.mxu0 0.0
    %319 = vmatprep.subr.mxu0 0.0
    %320 = vmatpush1.msra.mxu0 0.0
    %321 = vmatprep.subr.mxu0 0.0
    %322 = vmatpush1.msra.mxu0 0.0
    %323 = vmatprep.mubr.f32.mxu0 0.0
    %324 = vmatmul.mubr.f32.gmra.mrb[0].mxu0 %v254
    %v325 = vpop.f32.mrb[0].mxu0
    %v326 = vadd.f32 %v258, %v325
    %v327 = vpop.f32.mrb[0].mxu0
    %328 = vdwg.mxu0
    %v329 = vtanh.pop %v326
    %v330 = vmul.f32 %v329, %v329
    %v331 = vsub.f32 1.0, %v330
    %332 = vmatprep.subr.mxu0 0.0
    %333 = vmatpush1.msra.mxu0 %v68
    %334 = vmatprep.subr.mxu0 0.0
    %335 = vmatpush1.msra.mxu0 %v69
    %336 = vmatprep.subr.mxu0 0.0
    %337 = vmatpush1.msra.mxu0 %v70
    %338 = vmatprep.subr.mxu0 0.0
    %339 = vmatpush1.msra.mxu0 %v71
    %340 = vmatprep.subr.mxu0 0.0
    %341 = vmatpush1.msra.mxu0 %v72
    %342 = vmatprep.subr.mxu0 0.0
    %343 = vmatpush1.msra.mxu0 %v73
    %344 = vmatprep.subr.mxu0 0.0
    %345 = vmatpush1.msra.mxu0 %v74
    %346 = vmatprep.subr.mxu0 0.0
    %347 = vmatpush1.msra.mxu0 %v75
    %348 = vmatprep.subr.mxu0 0.0
    %349 = vmatpush1.msra.mxu0 %v76
    %350 = vmatprep.subr.mxu0 0.0
    %351 = vmatpush1.msra.mxu0 %v77
    %352 = vmatprep.subr.mxu0 0.0
    %353 = vmatpush1.msra.mxu0 %v78
    %354 = vmatprep.subr.mxu0 0.0
    %355 = vmatpush1.msra.mxu0 %v79
    %356 = vmatprep.subr.mxu0 0.0
    %357 = vmatpush1.msra.mxu0 %v80
    %358 = vmatprep.subr.mxu0 0.0
    %359 = vmatpush1.msra.mxu0 %v81
    %360 = vmatprep.subr.mxu0 0.0
    %361 = vmatpush1.msra.mxu0 %v82
    %362 = vmatprep.subr.mxu0 0.0
    %363 = vmatpush1.msra.mxu0 %v83
    %364 = vmatprep.subr.mxu0 0.0
    %365 = vmatpush1.msra.mxu0 %v84
    %366 = vmatprep.subr.mxu0 0.0
    %367 = vmatpush1.msra.mxu0 %v85
    %368 = vmatprep.subr.mxu0 0.0
    %369 = vmatpush1.msra.mxu0 %v86
    %370 = vmatprep.subr.mxu0 0.0
    %371 = vmatpush1.msra.mxu0 %v87
    %372 = vmatprep.subr.mxu0 0.0
    %373 = vmatpush1.msra.mxu0 %v88
    %374 = vmatprep.subr.mxu0 0.0
    %375 = vmatpush1.msra.mxu0 %v89
    %376 = vmatprep.subr.mxu0 0.0
    %377 = vmatpush1.msra.mxu0 %v90
    %378 = vmatprep.subr.mxu0 0.0
    %379 = vmatpush1.msra.mxu0 %v91
    %380 = vmatprep.subr.mxu0 0.0
    %381 = vmatpush1.msra.mxu0 %v92
    %382 = vmatprep.subr.mxu0 0.0
    %383 = vmatpush1.msra.mxu0 %v93
    %384 = vmatprep.subr.mxu0 0.0
    %385 = vmatpush1.msra.mxu0 %v94
    %386 = vmatprep.subr.mxu0 0.0
    %387 = vmatpush1.msra.mxu0 %v95
    %388 = vmatprep.subr.mxu0 0.0
    %389 = vmatpush1.msra.mxu0 %v96
    %390 = vmatprep.subr.mxu0 0.0
    %391 = vmatpush1.msra.mxu0 %v97
    %392 = vmatprep.subr.mxu0 0.0
    %393 = vmatpush1.msra.mxu0 %v98
    %394 = vmatprep.subr.mxu0 0.0
    %395 = vmatpush1.msra.mxu0 %v99
    %396 = vmatprep.mubr.f32.mxu0 %v331
    %397 = vmatmul.mubr.f32.gmra.mrb[0].mxu0 %v329
    %v398 = vpop.f32.mrb[0].mxu0
    %v399 = vadd.f32 %v182, %v398
    %v400 = vpop.f32.mrb[0].mxu0
    %401 = vdwg.mxu0
    %v402 = vmul.f32 %v399, 0.14285715
    %v403 = vadd.f32 %v254, %v402
    %v404 = vlaneseq
    %v405 = vshrl.u32 %v404, 7
    %v406 = vsub.s32 3, %v405
    %v407 = vrot.slane %v100, %v406
    %408 = vmatprep.subr.mxu0 0.0
    %409 = vmatpush1.msra.mxu0 %v52
    %410 = vmatprep.subr.mxu0 0.0
    %411 = vmatpush1.msra.mxu0 %v53
    %412 = vmatprep.subr.mxu0 0.0
    %413 = vmatpush1.msra.mxu0 %v54
    %414 = vmatprep.subr.mxu0 0.0
    %415 = vmatpush1.msra.mxu0 %v55
    %416 = vmatprep.subr.mxu0 0.0
    %417 = vmatpush1.msra.mxu0 %v56
    %418 = vmatprep.subr.mxu0 0.0
    %419 = vmatpush1.msra.mxu0 %v57
    %420 = vmatprep.subr.mxu0 0.0
    %421 = vmatpush1.msra.mxu0 %v58
    %422 = vmatprep.subr.mxu0 0.0
    %423 = vmatpush1.msra.mxu0 %v59
    %424 = vmatprep.subr.mxu0 0.0
    %425 = vmatpush1.msra.mxu0 %v60
    %426 = vmatprep.subr.mxu0 0.0
    %427 = vmatpush1.msra.mxu0 %v61
    %428 = vmatprep.subr.mxu0 0.0
    %429 = vmatpush1.msra.mxu0 %v62
    %430 = vmatprep.subr.mxu0 0.0
    %431 = vmatpush1.msra.mxu0 %v63
    %432 = vmatprep.subr.mxu0 0.0
    %433 = vmatpush1.msra.mxu0 %v64
    %434 = vmatprep.subr.mxu0 0.0
    %435 = vmatpush1.msra.mxu0 %v65
    %436 = vmatprep.subr.mxu0 0.0
    %437 = vmatpush1.msra.mxu0 %v66
    %438 = vmatprep.subr.mxu0 0.0
    %439 = vmatpush1.msra.mxu0 %v67
    %440 = vmatprep.subr.mxu0 0.0
    %441 = vmatpush1.msra.mxu0 0.0
    %442 = vmatprep.subr.mxu0 0.0
    %443 = vmatpush1.msra.mxu0 0.0
    %444 = vmatprep.subr.mxu0 0.0
    %445 = vmatpush1.msra.mxu0 0.0
    %446 = vmatprep.subr.mxu0 0.0
    %447 = vmatpush1.msra.mxu0 0.0
    %448 = vmatprep.subr.mxu0 0.0
    %449 = vmatpush1.msra.mxu0 0.0
    %450 = vmatprep.subr.mxu0 0.0
    %451 = vmatpush1.msra.mxu0 0.0
    %452 = vmatprep.subr.mxu0 0.0
    %453 = vmatpush1.msra.mxu0 0.0
    %454 = vmatprep.subr.mxu0 0.0
    %455 = vmatpush1.msra.mxu0 0.0
    %456 = vmatprep.subr.mxu0 0.0
    %457 = vmatpush1.msra.mxu0 0.0
    %458 = vmatprep.subr.mxu0 0.0
    %459 = vmatpush1.msra.mxu0 0.0
    %460 = vmatprep.subr.mxu0 0.0
    %461 = vmatpush1.msra.mxu0 0.0
    %462 = vmatprep.subr.mxu0 0.0
    %463 = vmatpush1.msra.mxu0 0.0
    %464 = vmatprep.subr.mxu0 0.0
    %465 = vmatpush1.msra.mxu0 0.0
    %466 = vmatprep.subr.mxu0 0.0
    %467 = vmatpush1.msra.mxu0 0.0
    %468 = vmatprep.subr.mxu0 0.0
    %469 = vmatpush1.msra.mxu0 0.0
    %470 = vmatprep.subr.mxu0 0.0
    %471 = vmatpush1.msra.mxu0 0.0
    %472 = vmatprep.mubr.f32.mxu0 0.0
    %473 = vmatmul.mubr.f32.gmra.mrb[0].mxu0 %v403
    %v474 = vpop.f32.mrb[0].mxu0
    %v475 = vadd.f32 %v407, %v474
    %v476 = vpop.f32.mrb[0].mxu0
    %477 = vdwg.mxu0
    %v478 = vtanh.pop %v475
    %v479 = vmul.f32 %v478, %v478
    %v480 = vsub.f32 1.0, %v479
    %481 = vmatprep.subr.mxu0 0.0
    %482 = vmatpush1.msra.mxu0 %v68
    %483 = vmatprep.subr.mxu0 0.0
    %484 = vmatpush1.msra.mxu0 %v69
    %485 = vmatprep.subr.mxu0 0.0
    %486 = vmatpush1.msra.mxu0 %v70
    %487 = vmatprep.subr.mxu0 0.0
    %488 = vmatpush1.msra.mxu0 %v71
    %489 = vmatprep.subr.mxu0 0.0
    %490 = vmatpush1.msra.mxu0 %v72
    %491 = vmatprep.subr.mxu0 0.0
    %492 = vmatpush1.msra.mxu0 %v73
    %493 = vmatprep.subr.mxu0 0.0
    %494 = vmatpush1.msra.mxu0 %v74
    %495 = vmatprep.subr.mxu0 0.0
    %496 = vmatpush1.msra.mxu0 %v75
    %497 = vmatprep.subr.mxu0 0.0
    %498 = vmatpush1.msra.mxu0 %v76
    %499 = vmatprep.subr.mxu0 0.0
    %500 = vmatpush1.msra.mxu0 %v77
    %501 = vmatprep.subr.mxu0 0.0
    %502 = vmatpush1.msra.mxu0 %v78
    %503 = vmatprep.subr.mxu0 0.0
    %504 = vmatpush1.msra.mxu0 %v79
    %505 = vmatprep.subr.mxu0 0.0
    %506 = vmatpush1.msra.mxu0 %v80
    %507 = vmatprep.subr.mxu0 0.0
    %508 = vmatpush1.msra.mxu0 %v81
    %509 = vmatprep.subr.mxu0 0.0
    %510 = vmatpush1.msra.mxu0 %v82
    %511 = vmatprep.subr.mxu0 0.0
    %512 = vmatpush1.msra.mxu0 %v83
    %513 = vmatprep.subr.mxu0 0.0
    %514 = vmatpush1.msra.mxu0 %v84
    %515 = vmatprep.subr.mxu0 0.0
    %516 = vmatpush1.msra.mxu0 %v85
    %517 = vmatprep.subr.mxu0 0.0
    %518 = vmatpush1.msra.mxu0 %v86
    %519 = vmatprep.subr.mxu0 0.0
    %520 = vmatpush1.msra.mxu0 %v87
    %521 = vmatprep.subr.mxu0 0.0
    %522 = vmatpush1.msra.mxu0 %v88
    %523 = vmatprep.subr.mxu0 0.0
    %524 = vmatpush1.msra.mxu0 %v89
    %525 = vmatprep.subr.mxu0 0.0
    %526 = vmatpush1.msra.mxu0 %v90
    %527 = vmatprep.subr.mxu0 0.0
    %528 = vmatpush1.msra.mxu0 %v91
    %529 = vmatprep.subr.mxu0 0.0
    %530 = vmatpush1.msra.mxu0 %v92
    %531 = vmatprep.subr.mxu0 0.0
    %532 = vmatpush1.msra.mxu0 %v93
    %533 = vmatprep.subr.mxu0 0.0
    %534 = vmatpush1.msra.mxu0 %v94
    %535 = vmatprep.subr.mxu0 0.0
    %536 = vmatpush1.msra.mxu0 %v95
    %537 = vmatprep.subr.mxu0 0.0
    %538 = vmatpush1.msra.mxu0 %v96
    %539 = vmatprep.subr.mxu0 0.0
    %540 = vmatpush1.msra.mxu0 %v97
    %541 = vmatprep.subr.mxu0 0.0
    %542 = vmatpush1.msra.mxu0 %v98
    %543 = vmatprep.subr.mxu0 0.0
    %544 = vmatpush1.msra.mxu0 %v99
    %545 = vmatprep.mubr.f32.mxu0 %v480
    %546 = vmatmul.mubr.f32.gmra.mrb[0].mxu0 %v478
    %v547 = vpop.f32.mrb[0].mxu0
    %v548 = vadd.f32 %v182, %v547
    %v549 = vpop.f32.mrb[0].mxu0
    %550 = vdwg.mxu0
    %v551 = vmul.f32 %v548, 0.14285715
    %v552 = vadd.f32 %v403, %v551
    %v553 = vlaneseq
    %v554 = vshrl.u32 %v553, 7
    %v555 = vsub.s32 4, %v554
    %v556 = vrot.slane %v100, %v555
    %557 = vmatprep.subr.mxu0 0.0
    %558 = vmatpush1.msra.mxu0 %v52
    %559 = vmatprep.subr.mxu0 0.0
    %560 = vmatpush1.msra.mxu0 %v53
    %561 = vmatprep.subr.mxu0 0.0
    %562 = vmatpush1.msra.mxu0 %v54
    %563 = vmatprep.subr.mxu0 0.0
    %564 = vmatpush1.msra.mxu0 %v55
    %565 = vmatprep.subr.mxu0 0.0
    %566 = vmatpush1.msra.mxu0 %v56
    %567 = vmatprep.subr.mxu0 0.0
    %568 = vmatpush1.msra.mxu0 %v57
    %569 = vmatprep.subr.mxu0 0.0
    %570 = vmatpush1.msra.mxu0 %v58
    %571 = vmatprep.subr.mxu0 0.0
    %572 = vmatpush1.msra.mxu0 %v59
    %573 = vmatprep.subr.mxu0 0.0
    %574 = vmatpush1.msra.mxu0 %v60
    %575 = vmatprep.subr.mxu0 0.0
    %576 = vmatpush1.msra.mxu0 %v61
    %577 = vmatprep.subr.mxu0 0.0
    %578 = vmatpush1.msra.mxu0 %v62
    %579 = vmatprep.subr.mxu0 0.0
    %580 = vmatpush1.msra.mxu0 %v63
    %581 = vmatprep.subr.mxu0 0.0
    %582 = vmatpush1.msra.mxu0 %v64
    %583 = vmatprep.subr.mxu0 0.0
    %584 = vmatpush1.msra.mxu0 %v65
    %585 = vmatprep.subr.mxu0 0.0
    %586 = vmatpush1.msra.mxu0 %v66
    %587 = vmatprep.subr.mxu0 0.0
    %588 = vmatpush1.msra.mxu0 %v67
    %589 = vmatprep.subr.mxu0 0.0
    %590 = vmatpush1.msra.mxu0 0.0
    %591 = vmatprep.subr.mxu0 0.0
    %592 = vmatpush1.msra.mxu0 0.0
    %593 = vmatprep.subr.mxu0 0.0
    %594 = vmatpush1.msra.mxu0 0.0
    %595 = vmatprep.subr.mxu0 0.0
    %596 = vmatpush1.msra.mxu0 0.0
    %597 = vmatprep.subr.mxu0 0.0
    %598 = vmatpush1.msra.mxu0 0.0
    %599 = vmatprep.subr.mxu0 0.0
    %600 = vmatpush1.msra.mxu0 0.0
    %601 = vmatprep.subr.mxu0 0.0
    %602 = vmatpush1.msra.mxu0 0.0
    %603 = vmatprep.subr.mxu0 0.0
    %604 = vmatpush1.msra.mxu0 0.0
    %605 = vmatprep.subr.mxu0 0.0
    %606 = vmatpush1.msra.mxu0 0.0
    %607 = vmatprep.subr.mxu0 0.0
    %608 = vmatpush1.msra.mxu0 0.0
    %609 = vmatprep.subr.mxu0 0.0
    %610 = vmatpush1.msra.mxu0 0.0
    %611 = vmatprep.subr.mxu0 0.0
    %612 = vmatpush1.msra.mxu0 0.0
    %613 = vmatprep.subr.mxu0 0.0
    %614 = vmatpush1.msra.mxu0 0.0
    %615 = vmatprep.subr.mxu0 0.0
    %616 = vmatpush1.msra.mxu0 0.0
    %617 = vmatprep.subr.mxu0 0.0
    %618 = vmatpush1.msra.mxu0 0.0
    %619 = vmatprep.subr.mxu0 0.0
    %620 = vmatpush1.msra.mxu0 0.0
    %621 = vmatprep.mubr.f32.mxu0 0.0
    %622 = vmatmul.mubr.f32.gmra.mrb[0].mxu0 %v552
    %v623 = vpop.f32.mrb[0].mxu0
    %v624 = vadd.f32 %v556, %v623
    %v625 = vpop.f32.mrb[0].mxu0
    %626 = vdwg.mxu0
    %v627 = vtanh.pop %v624
    %v628 = vmul.f32 %v627, %v627
    %v629 = vsub.f32 1.0, %v628
    %630 = vmatprep.subr.mxu0 0.0
    %631 = vmatpush1.msra.mxu0 %v68
    %632 = vmatprep.subr.mxu0 0.0
    %633 = vmatpush1.msra.mxu0 %v69
    %634 = vmatprep.subr.mxu0 0.0
    %635 = vmatpush1.msra.mxu0 %v70
    %636 = vmatprep.subr.mxu0 0.0
    %637 = vmatpush1.msra.mxu0 %v71
    %638 = vmatprep.subr.mxu0 0.0
    %639 = vmatpush1.msra.mxu0 %v72
    %640 = vmatprep.subr.mxu0 0.0
    %641 = vmatpush1.msra.mxu0 %v73
    %642 = vmatprep.subr.mxu0 0.0
    %643 = vmatpush1.msra.mxu0 %v74
    %644 = vmatprep.subr.mxu0 0.0
    %645 = vmatpush1.msra.mxu0 %v75
    %646 = vmatprep.subr.mxu0 0.0
    %647 = vmatpush1.msra.mxu0 %v76
    %648 = vmatprep.subr.mxu0 0.0
    %649 = vmatpush1.msra.mxu0 %v77
    %650 = vmatprep.subr.mxu0 0.0
    %651 = vmatpush1.msra.mxu0 %v78
    %652 = vmatprep.subr.mxu0 0.0
    %653 = vmatpush1.msra.mxu0 %v79
    %654 = vmatprep.subr.mxu0 0.0
    %655 = vmatpush1.msra.mxu0 %v80
    %656 = vmatprep.subr.mxu0 0.0
    %657 = vmatpush1.msra.mxu0 %v81
    %658 = vmatprep.subr.mxu0 0.0
    %659 = vmatpush1.msra.mxu0 %v82
    %660 = vmatprep.subr.mxu0 0.0
    %661 = vmatpush1.msra.mxu0 %v83
    %662 = vmatprep.subr.mxu0 0.0
    %663 = vmatpush1.msra.mxu0 %v84
    %664 = vmatprep.subr.mxu0 0.0
    %665 = vmatpush1.msra.mxu0 %v85
    %666 = vmatprep.subr.mxu0 0.0
    %667 = vmatpush1.msra.mxu0 %v86
    %668 = vmatprep.subr.mxu0 0.0
    %669 = vmatpush1.msra.mxu0 %v87
    %670 = vmatprep.subr.mxu0 0.0
    %671 = vmatpush1.msra.mxu0 %v88
    %672 = vmatprep.subr.mxu0 0.0
    %673 = vmatpush1.msra.mxu0 %v89
    %674 = vmatprep.subr.mxu0 0.0
    %675 = vmatpush1.msra.mxu0 %v90
    %676 = vmatprep.subr.mxu0 0.0
    %677 = vmatpush1.msra.mxu0 %v91
    %678 = vmatprep.subr.mxu0 0.0
    %679 = vmatpush1.msra.mxu0 %v92
    %680 = vmatprep.subr.mxu0 0.0
    %681 = vmatpush1.msra.mxu0 %v93
    %682 = vmatprep.subr.mxu0 0.0
    %683 = vmatpush1.msra.mxu0 %v94
    %684 = vmatprep.subr.mxu0 0.0
    %685 = vmatpush1.msra.mxu0 %v95
    %686 = vmatprep.subr.mxu0 0.0
    %687 = vmatpush1.msra.mxu0 %v96
    %688 = vmatprep.subr.mxu0 0.0
    %689 = vmatpush1.msra.mxu0 %v97
    %690 = vmatprep.subr.mxu0 0.0
    %691 = vmatpush1.msra.mxu0 %v98
    %692 = vmatprep.subr.mxu0 0.0
    %693 = vmatpush1.msra.mxu0 %v99
    %694 = vmatprep.mubr.f32.mxu0 %v629
    %695 = vmatmul.mubr.f32.gmra.mrb[0].mxu0 %v627
    %v696 = vpop.f32.mrb[0].mxu0
    %v697 = vadd.f32 %v182, %v696
    %v698 = vpop.f32.mrb[0].mxu0
    %699 = vdwg.mxu0
    %v700 = vmul.f32 %v697, 0.14285715
    %v701 = vadd.f32 %v552, %v700
    %v702 = vlaneseq
    %v703 = vshrl.u32 %v702, 7
    %v704 = vsub.s32 5, %v703
    %v705 = vrot.slane %v100, %v704
    %706 = vmatprep.subr.mxu0 0.0
    %707 = vmatpush1.msra.mxu0 %v52
    %708 = vmatprep.subr.mxu0 0.0
    %709 = vmatpush1.msra.mxu0 %v53
    %710 = vmatprep.subr.mxu0 0.0
    %711 = vmatpush1.msra.mxu0 %v54
    %712 = vmatprep.subr.mxu0 0.0
    %713 = vmatpush1.msra.mxu0 %v55
    %714 = vmatprep.subr.mxu0 0.0
    %715 = vmatpush1.msra.mxu0 %v56
    %716 = vmatprep.subr.mxu0 0.0
    %717 = vmatpush1.msra.mxu0 %v57
    %718 = vmatprep.subr.mxu0 0.0
    %719 = vmatpush1.msra.mxu0 %v58
    %720 = vmatprep.subr.mxu0 0.0
    %721 = vmatpush1.msra.mxu0 %v59
    %722 = vmatprep.subr.mxu0 0.0
    %723 = vmatpush1.msra.mxu0 %v60
    %724 = vmatprep.subr.mxu0 0.0
    %725 = vmatpush1.msra.mxu0 %v61
    %726 = vmatprep.subr.mxu0 0.0
    %727 = vmatpush1.msra.mxu0 %v62
    %728 = vmatprep.subr.mxu0 0.0
    %729 = vmatpush1.msra.mxu0 %v63
    %730 = vmatprep.subr.mxu0 0.0
    %731 = vmatpush1.msra.mxu0 %v64
    %732 = vmatprep.subr.mxu0 0.0
    %733 = vmatpush1.msra.mxu0 %v65
    %734 = vmatprep.subr.mxu0 0.0
    %735 = vmatpush1.msra.mxu0 %v66
    %736 = vmatprep.subr.mxu0 0.0
    %737 = vmatpush1.msra.mxu0 %v67
    %738 = vmatprep.subr.mxu0 0.0
    %739 = vmatpush1.msra.mxu0 0.0
    %740 = vmatprep.subr.mxu0 0.0
    %741 = vmatpush1.msra.mxu0 0.0
    %742 = vmatprep.subr.mxu0 0.0
    %743 = vmatpush1.msra.mxu0 0.0
    %744 = vmatprep.subr.mxu0 0.0
    %745 = vmatpush1.msra.mxu0 0.0
    %746 = vmatprep.subr.mxu0 0.0
    %747 = vmatpush1.msra.mxu0 0.0
    %748 = vmatprep.subr.mxu0 0.0
    %749 = vmatpush1.msra.mxu0 0.0
    %750 = vmatprep.subr.mxu0 0.0
    %751 = vmatpush1.msra.mxu0 0.0
    %752 = vmatprep.subr.mxu0 0.0
    %753 = vmatpush1.msra.mxu0 0.0
    %754 = vmatprep.subr.mxu0 0.0
    %755 = vmatpush1.msra.mxu0 0.0
    %756 = vmatprep.subr.mxu0 0.0
    %757 = vmatpush1.msra.mxu0 0.0
    %758 = vmatprep.subr.mxu0 0.0
    %759 = vmatpush1.msra.mxu0 0.0
    %760 = vmatprep.subr.mxu0 0.0
    %761 = vmatpush1.msra.mxu0 0.0
    %762 = vmatprep.subr.mxu0 0.0
    %763 = vmatpush1.msra.mxu0 0.0
    %764 = vmatprep.subr.mxu0 0.0
    %765 = vmatpush1.msra.mxu0 0.0
    %766 = vmatprep.subr.mxu0 0.0
    %767 = vmatpush1.msra.mxu0 0.0
    %768 = vmatprep.subr.mxu0 0.0
    %769 = vmatpush1.msra.mxu0 0.0
    %770 = vmatprep.mubr.f32.mxu0 0.0
    %771 = vmatmul.mubr.f32.gmra.mrb[0].mxu0 %v701
    %v772 = vpop.f32.mrb[0].mxu0
    %v773 = vadd.f32 %v705, %v772
    %v774 = vpop.f32.mrb[0].mxu0
    %775 = vdwg.mxu0
    %v776 = vtanh.pop %v773
    %v777 = vmul.f32 %v776, %v776
    %v778 = vsub.f32 1.0, %v777
    %779 = vmatprep.subr.mxu0 0.0
    %780 = vmatpush1.msra.mxu0 %v68
    %781 = vmatprep.subr.mxu0 0.0
    %782 = vmatpush1.msra.mxu0 %v69
    %783 = vmatprep.subr.mxu0 0.0
    %784 = vmatpush1.msra.mxu0 %v70
    %785 = vmatprep.subr.mxu0 0.0
    %786 = vmatpush1.msra.mxu0 %v71
    %787 = vmatprep.subr.mxu0 0.0
    %788 = vmatpush1.msra.mxu0 %v72
    %789 = vmatprep.subr.mxu0 0.0
    %790 = vmatpush1.msra.mxu0 %v73
    %791 = vmatprep.subr.mxu0 0.0
    %792 = vmatpush1.msra.mxu0 %v74
    %793 = vmatprep.subr.mxu0 0.0
    %794 = vmatpush1.msra.mxu0 %v75
    %795 = vmatprep.subr.mxu0 0.0
    %796 = vmatpush1.msra.mxu0 %v76
    %797 = vmatprep.subr.mxu0 0.0
    %798 = vmatpush1.msra.mxu0 %v77
    %799 = vmatprep.subr.mxu0 0.0
    %800 = vmatpush1.msra.mxu0 %v78
    %801 = vmatprep.subr.mxu0 0.0
    %802 = vmatpush1.msra.mxu0 %v79
    %803 = vmatprep.subr.mxu0 0.0
    %804 = vmatpush1.msra.mxu0 %v80
    %805 = vmatprep.subr.mxu0 0.0
    %806 = vmatpush1.msra.mxu0 %v81
    %807 = vmatprep.subr.mxu0 0.0
    %808 = vmatpush1.msra.mxu0 %v82
    %809 = vmatprep.subr.mxu0 0.0
    %810 = vmatpush1.msra.mxu0 %v83
    %811 = vmatprep.subr.mxu0 0.0
    %812 = vmatpush1.msra.mxu0 %v84
    %813 = vmatprep.subr.mxu0 0.0
    %814 = vmatpush1.msra.mxu0 %v85
    %815 = vmatprep.subr.mxu0 0.0
    %816 = vmatpush1.msra.mxu0 %v86
    %817 = vmatprep.subr.mxu0 0.0
    %818 = vmatpush1.msra.mxu0 %v87
    %819 = vmatprep.subr.mxu0 0.0
    %820 = vmatpush1.msra.mxu0 %v88
    %821 = vmatprep.subr.mxu0 0.0
    %822 = vmatpush1.msra.mxu0 %v89
    %823 = vmatprep.subr.mxu0 0.0
    %824 = vmatpush1.msra.mxu0 %v90
    %825 = vmatprep.subr.mxu0 0.0
    %826 = vmatpush1.msra.mxu0 %v91
    %827 = vmatprep.subr.mxu0 0.0
    %828 = vmatpush1.msra.mxu0 %v92
    %829 = vmatprep.subr.mxu0 0.0
    %830 = vmatpush1.msra.mxu0 %v93
    %831 = vmatprep.subr.mxu0 0.0
    %832 = vmatpush1.msra.mxu0 %v94
    %833 = vmatprep.subr.mxu0 0.0
    %834 = vmatpush1.msra.mxu0 %v95
    %835 = vmatprep.subr.mxu0 0.0
    %836 = vmatpush1.msra.mxu0 %v96
    %837 = vmatprep.subr.mxu0 0.0
    %838 = vmatpush1.msra.mxu0 %v97
    %839 = vmatprep.subr.mxu0 0.0
    %840 = vmatpush1.msra.mxu0 %v98
    %841 = vmatprep.subr.mxu0 0.0
    %842 = vmatpush1.msra.mxu0 %v99
    %843 = vmatprep.mubr.f32.mxu0 %v778
    %844 = vmatmul.mubr.f32.gmra.mrb[0].mxu0 %v776
    %v845 = vpop.f32.mrb[0].mxu0
    %v846 = vadd.f32 %v182, %v845
    %v847 = vpop.f32.mrb[0].mxu0
    %848 = vdwg.mxu0
    %v849 = vmul.f32 %v846, 0.14285715
    %v850 = vadd.f32 %v701, %v849
    %v851 = vlaneseq
    %v852 = vshrl.u32 %v851, 7
    %v853 = vsub.s32 6, %v852
    %v854 = vrot.slane %v100, %v853
    %855 = vmatprep.subr.mxu0 0.0
    %856 = vmatpush1.msra.mxu0 %v52
    %857 = vmatprep.subr.mxu0 0.0
    %858 = vmatpush1.msra.mxu0 %v53
    %859 = vmatprep.subr.mxu0 0.0
    %860 = vmatpush1.msra.mxu0 %v54
    %861 = vmatprep.subr.mxu0 0.0
    %862 = vmatpush1.msra.mxu0 %v55
    %863 = vmatprep.subr.mxu0 0.0
    %864 = vmatpush1.msra.mxu0 %v56
    %865 = vmatprep.subr.mxu0 0.0
    %866 = vmatpush1.msra.mxu0 %v57
    %867 = vmatprep.subr.mxu0 0.0
    %868 = vmatpush1.msra.mxu0 %v58
    %869 = vmatprep.subr.mxu0 0.0
    %870 = vmatpush1.msra.mxu0 %v59
    %871 = vmatprep.subr.mxu0 0.0
    %872 = vmatpush1.msra.mxu0 %v60
    %873 = vmatprep.subr.mxu0 0.0
    %874 = vmatpush1.msra.mxu0 %v61
    %875 = vmatprep.subr.mxu0 0.0
    %876 = vmatpush1.msra.mxu0 %v62
    %877 = vmatprep.subr.mxu0 0.0
    %878 = vmatpush1.msra.mxu0 %v63
    %879 = vmatprep.subr.mxu0 0.0
    %880 = vmatpush1.msra.mxu0 %v64
    %881 = vmatprep.subr.mxu0 0.0
    %882 = vmatpush1.msra.mxu0 %v65
    %883 = vmatprep.subr.mxu0 0.0
    %884 = vmatpush1.msra.mxu0 %v66
    %885 = vmatprep.subr.mxu0 0.0
    %886 = vmatpush1.msra.mxu0 %v67
    %887 = vmatprep.subr.mxu0 0.0
    %888 = vmatpush1.msra.mxu0 0.0
    %889 = vmatprep.subr.mxu0 0.0
    %890 = vmatpush1.msra.mxu0 0.0
    %891 = vmatprep.subr.mxu0 0.0
    %892 = vmatpush1.msra.mxu0 0.0
    %893 = vmatprep.subr.mxu0 0.0
    %894 = vmatpush1.msra.mxu0 0.0
    %895 = vmatprep.subr.mxu0 0.0
    %896 = vmatpush1.msra.mxu0 0.0
    %897 = vmatprep.subr.mxu0 0.0
    %898 = vmatpush1.msra.mxu0 0.0
    %899 = vmatprep.subr.mxu0 0.0
    %900 = vmatpush1.msra.mxu0 0.0
    %901 = vmatprep.subr.mxu0 0.0
    %902 = vmatpush1.msra.mxu0 0.0
    %903 = vmatprep.subr.mxu0 0.0
    %904 = vmatpush1.msra.mxu0 0.0
    %905 = vmatprep.subr.mxu0 0.0
    %906 = vmatpush1.msra.mxu0 0.0
    %907 = vmatprep.subr.mxu0 0.0
    %908 = vmatpush1.msra.mxu0 0.0
    %909 = vmatprep.subr.mxu0 0.0
    %910 = vmatpush1.msra.mxu0 0.0
    %911 = vmatprep.subr.mxu0 0.0
    %912 = vmatpush1.msra.mxu0 0.0
    %913 = vmatprep.subr.mxu0 0.0
    %914 = vmatpush1.msra.mxu0 0.0
    %915 = vmatprep.subr.mxu0 0.0
    %916 = vmatpush1.msra.mxu0 0.0
    %917 = vmatprep.subr.mxu0 0.0
    %918 = vmatpush1.msra.mxu0 0.0
    %919 = vmatprep.mubr.f32.mxu0 0.0
    %920 = vmatmul.mubr.f32.gmra.mrb[0].mxu0 %v850
    %v921 = vpop.f32.mrb[0].mxu0
    %v922 = vadd.f32 %v854, %v921
    %v923 = vpop.f32.mrb[0].mxu0
    %924 = vdwg.mxu0
    %v925 = vtanh.pop %v922
    %v926 = vmul.f32 %v925, %v925
    %v927 = vsub.f32 1.0, %v926
    %928 = vmatprep.subr.mxu0 0.0
    %929 = vmatpush1.msra.mxu0 %v68
    %930 = vmatprep.subr.mxu0 0.0
    %931 = vmatpush1.msra.mxu0 %v69
    %932 = vmatprep.subr.mxu0 0.0
    %933 = vmatpush1.msra.mxu0 %v70
    %934 = vmatprep.subr.mxu0 0.0
    %935 = vmatpush1.msra.mxu0 %v71
    %936 = vmatprep.subr.mxu0 0.0
    %937 = vmatpush1.msra.mxu0 %v72
    %938 = vmatprep.subr.mxu0 0.0
    %939 = vmatpush1.msra.mxu0 %v73
    %940 = vmatprep.subr.mxu0 0.0
    %941 = vmatpush1.msra.mxu0 %v74
    %942 = vmatprep.subr.mxu0 0.0
    %943 = vmatpush1.msra.mxu0 %v75
    %944 = vmatprep.subr.mxu0 0.0
    %945 = vmatpush1.msra.mxu0 %v76
    %946 = vmatprep.subr.mxu0 0.0
    %947 = vmatpush1.msra.mxu0 %v77
    %948 = vmatprep.subr.mxu0 0.0
    %949 = vmatpush1.msra.mxu0 %v78
    %950 = vmatprep.subr.mxu0 0.0
    %951 = vmatpush1.msra.mxu0 %v79
    %952 = vmatprep.subr.mxu0 0.0
    %953 = vmatpush1.msra.mxu0 %v80
    %954 = vmatprep.subr.mxu0 0.0
    %955 = vmatpush1.msra.mxu0 %v81
    %956 = vmatprep.subr.mxu0 0.0
    %957 = vmatpush1.msra.mxu0 %v82
    %958 = vmatprep.subr.mxu0 0.0
    %959 = vmatpush1.msra.mxu0 %v83
    %960 = vmatprep.subr.mxu0 0.0
    %961 = vmatpush1.msra.mxu0 %v84
    %962 = vmatprep.subr.mxu0 0.0
    %963 = vmatpush1.msra.mxu0 %v85
    %964 = vmatprep.subr.mxu0 0.0
    %965 = vmatpush1.msra.mxu0 %v86
    %966 = vmatprep.subr.mxu0 0.0
    %967 = vmatpush1.msra.mxu0 %v87
    %968 = vmatprep.subr.mxu0 0.0
    %969 = vmatpush1.msra.mxu0 %v88
    %970 = vmatprep.subr.mxu0 0.0
    %971 = vmatpush1.msra.mxu0 %v89
    %972 = vmatprep.subr.mxu0 0.0
    %973 = vmatpush1.msra.mxu0 %v90
    %974 = vmatprep.subr.mxu0 0.0
    %975 = vmatpush1.msra.mxu0 %v91
    %976 = vmatprep.subr.mxu0 0.0
    %977 = vmatpush1.msra.mxu0 %v92
    %978 = vmatprep.subr.mxu0 0.0
    %979 = vmatpush1.msra.mxu0 %v93
    %980 = vmatprep.subr.mxu0 0.0
    %981 = vmatpush1.msra.mxu0 %v94
    %982 = vmatprep.subr.mxu0 0.0
    %983 = vmatpush1.msra.mxu0 %v95
    %984 = vmatprep.subr.mxu0 0.0
    %985 = vmatpush1.msra.mxu0 %v96
    %986 = vmatprep.subr.mxu0 0.0
    %987 = vmatpush1.msra.mxu0 %v97
    %988 = vmatprep.subr.mxu0 0.0
    %989 = vmatpush1.msra.mxu0 %v98
    %990 = vmatprep.subr.mxu0 0.0
    %991 = vmatpush1.msra.mxu0 %v99
    %992 = vmatprep.mubr.f32.mxu0 %v927
    %993 = vmatmul.mubr.f32.gmra.mrb[0].mxu0 %v925
    %v994 = vpop.f32.mrb[0].mxu0
    %v995 = vadd.f32 %v182, %v994
    %v996 = vpop.f32.mrb[0].mxu0
    %997 = vdwg.mxu0
    %v998 = vmul.f32 %v995, 0.14285715
    %v999 = vadd.f32 %v850, %v998
    %v1000 = vlaneseq
    %v1001 = vshrl.u32 %v1000, 7
    %v1002 = vsub.s32 7, %v1001
    %v1003 = vrot.slane %v100, %v1002
    %1004 = vmatprep.subr.mxu0 0.0
    %1005 = vmatpush1.msra.mxu0 %v52
    %1006 = vmatprep.subr.mxu0 0.0
    %1007 = vmatpush1.msra.mxu0 %v53
    %1008 = vmatprep.subr.mxu0 0.0
    %1009 = vmatpush1.msra.mxu0 %v54
    %1010 = vmatprep.subr.mxu0 0.0
    %1011 = vmatpush1.msra.mxu0 %v55
    %1012 = vmatprep.subr.mxu0 0.0
    %1013 = vmatpush1.msra.mxu0 %v56
    %1014 = vmatprep.subr.mxu0 0.0
    %1015 = vmatpush1.msra.mxu0 %v57
    %1016 = vmatprep.subr.mxu0 0.0
    %1017 = vmatpush1.msra.mxu0 %v58
    %1018 = vmatprep.subr.mxu0 0.0
    %1019 = vmatpush1.msra.mxu0 %v59
    %1020 = vmatprep.subr.mxu0 0.0
    %1021 = vmatpush1.msra.mxu0 %v60
    %1022 = vmatprep.subr.mxu0 0.0
    %1023 = vmatpush1.msra.mxu0 %v61
    %1024 = vmatprep.subr.mxu0 0.0
    %1025 = vmatpush1.msra.mxu0 %v62
    %1026 = vmatprep.subr.mxu0 0.0
    %1027 = vmatpush1.msra.mxu0 %v63
    %1028 = vmatprep.subr.mxu0 0.0
    %1029 = vmatpush1.msra.mxu0 %v64
    %1030 = vmatprep.subr.mxu0 0.0
    %1031 = vmatpush1.msra.mxu0 %v65
    %1032 = vmatprep.subr.mxu0 0.0
    %1033 = vmatpush1.msra.mxu0 %v66
    %1034 = vmatprep.subr.mxu0 0.0
    %1035 = vmatpush1.msra.mxu0 %v67
    %1036 = vmatprep.subr.mxu0 0.0
    %1037 = vmatpush1.msra.mxu0 0.0
    %1038 = vmatprep.subr.mxu0 0.0
    %1039 = vmatpush1.msra.mxu0 0.0
    %1040 = vmatprep.subr.mxu0 0.0
    %1041 = vmatpush1.msra.mxu0 0.0
    %1042 = vmatprep.subr.mxu0 0.0
    %1043 = vmatpush1.msra.mxu0 0.0
    %1044 = vmatprep.subr.mxu0 0.0
    %1045 = vmatpush1.msra.mxu0 0.0
    %1046 = vmatprep.subr.mxu0 0.0
    %1047 = vmatpush1.msra.mxu0 0.0
    %1048 = vmatprep.subr.mxu0 0.0
    %1049 = vmatpush1.msra.mxu0 0.0
    %1050 = vmatprep.subr.mxu0 0.0
    %1051 = vmatpush1.msra.mxu0 0.0
    %1052 = vmatprep.subr.mxu0 0.0
    %1053 = vmatpush1.msra.mxu0 0.0
    %1054 = vmatprep.subr.mxu0 0.0
    %1055 = vmatpush1.msra.mxu0 0.0
    %1056 = vmatprep.subr.mxu0 0.0
    %1057 = vmatpush1.msra.mxu0 0.0
    %1058 = vmatprep.subr.mxu0 0.0
    %1059 = vmatpush1.msra.mxu0 0.0
    %1060 = vmatprep.subr.mxu0 0.0
    %1061 = vmatpush1.msra.mxu0 0.0
    %1062 = vmatprep.subr.mxu0 0.0
    %1063 = vmatpush1.msra.mxu0 0.0
    %1064 = vmatprep.subr.mxu0 0.0
    %1065 = vmatpush1.msra.mxu0 0.0
    %1066 = vmatprep.subr.mxu0 0.0
    %1067 = vmatpush1.msra.mxu0 0.0
    %1068 = vmatprep.mubr.f32.mxu0 0.0
    %1069 = vmatmul.mubr.f32.gmra.mrb[0].mxu0 %v999
    %v1070 = vpop.f32.mrb[0].mxu0
    %v1071 = vadd.f32 %v1003, %v1070
    %v1072 = vpop.f32.mrb[0].mxu0
    %1073 = vdwg.mxu0
    %v1074 = vtanh.pop %v1071
    %v1075 = vmul.f32 %v1074, %v1074
    %v1076 = vsub.f32 1.0, %v1075
    %1077 = vmatprep.subr.mxu0 0.0
    %1078 = vmatpush1.msra.mxu0 %v68
    %1079 = vmatprep.subr.mxu0 0.0
    %1080 = vmatpush1.msra.mxu0 %v69
    %1081 = vmatprep.subr.mxu0 0.0
    %1082 = vmatpush1.msra.mxu0 %v70
    %1083 = vmatprep.subr.mxu0 0.0
    %1084 = vmatpush1.msra.mxu0 %v71
    %1085 = vmatprep.subr.mxu0 0.0
    %1086 = vmatpush1.msra.mxu0 %v72
    %1087 = vmatprep.subr.mxu0 0.0
    %1088 = vmatpush1.msra.mxu0 %v73
    %1089 = vmatprep.subr.mxu0 0.0
    %1090 = vmatpush1.msra.mxu0 %v74
    %1091 = vmatprep.subr.mxu0 0.0
    %1092 = vmatpush1.msra.mxu0 %v75
    %1093 = vmatprep.subr.mxu0 0.0
    %1094 = vmatpush1.msra.mxu0 %v76
    %1095 = vmatprep.subr.mxu0 0.0
    %1096 = vmatpush1.msra.mxu0 %v77
    %1097 = vmatprep.subr.mxu0 0.0
    %1098 = vmatpush1.msra.mxu0 %v78
    %1099 = vmatprep.subr.mxu0 0.0
    %1100 = vmatpush1.msra.mxu0 %v79
    %1101 = vmatprep.subr.mxu0 0.0
    %1102 = vmatpush1.msra.mxu0 %v80
    %1103 = vmatprep.subr.mxu0 0.0
    %1104 = vmatpush1.msra.mxu0 %v81
    %1105 = vmatprep.subr.mxu0 0.0
    %1106 = vmatpush1.msra.mxu0 %v82
    %1107 = vmatprep.subr.mxu0 0.0
    %1108 = vmatpush1.msra.mxu0 %v83
    %1109 = vmatprep.subr.mxu0 0.0
    %1110 = vmatpush1.msra.mxu0 %v84
    %1111 = vmatprep.subr.mxu0 0.0
    %1112 = vmatpush1.msra.mxu0 %v85
    %1113 = vmatprep.subr.mxu0 0.0
    %1114 = vmatpush1.msra.mxu0 %v86
    %1115 = vmatprep.subr.mxu0 0.0
    %1116 = vmatpush1.msra.mxu0 %v87
    %1117 = vmatprep.subr.mxu0 0.0
    %1118 = vmatpush1.msra.mxu0 %v88
    %1119 = vmatprep.subr.mxu0 0.0
    %1120 = vmatpush1.msra.mxu0 %v89
    %1121 = vmatprep.subr.mxu0 0.0
    %1122 = vmatpush1.msra.mxu0 %v90
    %1123 = vmatprep.subr.mxu0 0.0
    %1124 = vmatpush1.msra.mxu0 %v91
    %1125 = vmatprep.subr.mxu0 0.0
    %1126 = vmatpush1.msra.mxu0 %v92
    %1127 = vmatprep.subr.mxu0 0.0
    %1128 = vmatpush1.msra.mxu0 %v93
    %1129 = vmatprep.subr.mxu0 0.0
    %1130 = vmatpush1.msra.mxu0 %v94
    %1131 = vmatprep.subr.mxu0 0.0
    %1132 = vmatpush1.msra.mxu0 %v95
    %1133 = vmatprep.subr.mxu0 0.0
    %1134 = vmatpush1.msra.mxu0 %v96
    %1135 = vmatprep.subr.mxu0 0.0
    %1136 = vmatpush1.msra.mxu0 %v97
    %1137 = vmatprep.subr.mxu0 0.0
    %1138 = vmatpush1.msra.mxu0 %v98
    %1139 = vmatprep.subr.mxu0 0.0
    %1140 = vmatpush1.msra.mxu0 %v99
    %1141 = vmatprep.mubr.f32.mxu0 %v1076
    %1142 = vmatmul.mubr.f32.gmra.mrb[0].mxu0 %v1074
    %v1143 = vpop.f32.mrb[0].mxu0
    %v1144 = vadd.f32 %v182, %v1143
    %v1145 = vpop.f32.mrb[0].mxu0
    %1146 = vdwg.mxu0
    %v1147 = vmul.f32 %v1144, 0.14285715
    %v1148 = vadd.f32 %v999, %v1147
    %1149 = vst [vmem:[#allocation8] sm:$0xff] %v1148
    // Predicated region
    $region26: #{tpu_custom_call.1} parent=1 // pred_check
      _
    $region27: #{tpu_custom_call.1} parent=1 // pred_check_branch
      %1151 = sbr.rel (0) target = $region29
    $region28: #{tpu_custom_call.1} parent=1 // pred_region
      %s1153 = ssub.s32 128, 128
      %1154 = vsyncadd [#allocation4], %s1153
      %s1156 = sshll.u32 [#allocation8], 4
      %s1157 = int_to_ptr.vmem [resolvable:$true] %s1156
      %1159 = dma.vmem_to_hbm [thread:$0]  %s1157, 128, %s3, [#allocation4]
    $region29: #{tpu_custom_call.1} parent=1 // pred_fallthru
      _
    // Predicated region
    $region30: #{tpu_custom_call.1} parent=1 // pred_check
      _
    $region31: #{tpu_custom_call.1} parent=1 // pred_check_branch
      %1161 = sbr.rel (0) target = $region33
    $region32: #{tpu_custom_call.1} parent=1 // pred_region
      %1162 = dma.done [#allocation4], 128
    $region33: #{tpu_custom_call.1} parent=1 // pred_fallthru
      _
    %1163 = vsyncpa [#allocation3], 1
    %1164 = vsyncpa [#allocation6], 1
    %1165 = vsyncpa [#allocation4], 1

</llo_original>
